<compile_context>
chip_gen: v7x
topology: tpu7x:2x2x1
jax: 0.10.0
libtpu: 0.0.40
codegen_flags: <defaults>
</compile_context>

<pallas_src>
import jax
import jax.numpy as jnp
from jax import lax
from jax.experimental import pallas as pl
from jax.experimental.pallas import tpu as pltpu

# ---- config (small, consistent with the module) ----------------------------
B   = 8           # batch
OH  = 16          # dataset_highest_number (one-hot width)
H   = 32          # model_hidden_width
L   = 2           # model_hidden_layers
ACT = "tanh"      # activation
E_PAD = ((3 * H + 127) // 128) * 128   # lane-dense width for the e output (=128)


def _act(x):
    return jnp.tanh(x) if ACT == "tanh" else jnp.where(x > 0, x, 0.01 * x)


def neural_arithmetic2_kernel(tgt_ref,
                              we_ref, be_ref,
                              w1_ref, b1_ref,
                              w2_ref, b2_ref,
                              w3_ref, b3_ref,
                              wfe_ref, bfe_ref,
                              x_out_ref, e_out_ref):
    # Fused one-hot for all four columns: one VPU compare over (B, 4*OH).
    iota = lax.broadcasted_iota(jnp.int32, (B, 4 * OH), 1)            # (B, 64)
    onehot = (iota == tgt_ref[...]).astype(jnp.float32)               # (B, 64)

    # Fused embed: block-diagonal weight gives cat(w,x,y,z) directly. (B, 4H)
    h = jnp.dot(onehot, we_ref[...],
                preferred_element_type=jnp.float32) + be_ref[...]

    # ff1: L x (Linear(4H,4H) + act)
    for l in range(L):
        h = _act(jnp.dot(h, w1_ref[l],
                         preferred_element_type=jnp.float32) + b1_ref[l])

    # split a,b,c,d -> identities -> concat == no-op; go straight to ff2
    for l in range(L):
        h = _act(jnp.dot(h, w2_ref[l],
                         preferred_element_type=jnp.float32) + b2_ref[l])

    # e head on the ff2 output: zero-padded wfe replaces the h[:, :H] lane
    # slice; extra output lanes are junk (zeros) and sliced off in the wrapper.
    e_out_ref[...] = _act(jnp.dot(h, wfe_ref[...],
                                  preferred_element_type=jnp.float32) + bfe_ref[...])

    # ff3: L Linears with act between, last activation dropped (layers[:-1])
    for l in range(L):
        h = jnp.dot(h, w3_ref[l],
                    preferred_element_type=jnp.float32) + b3_ref[l]
        if l < L - 1:
            h = _act(h)

    x_out_ref[...] = h                                                 # (B, 4H)


def neural_arithmetic2(idx, params):
    (we, be, w1, b1, w2, b2, w3, b3, wfe, bfe) = params

    # ---- wrapper-side layout plumbing (pure XLA, done once per call) -------
    # offset targets for the fused one-hot: targets[b, l] = idx[b, l//OH] + (l//OH)*OH
    offs = jnp.arange(4, dtype=jnp.int32) * OH
    targets = jnp.repeat(idx + offs[None, :], OH, axis=1)              # (B, 4*OH)

    # block-diagonal embed weight + 4x-tiled bias
    we_blk = jnp.zeros((4 * OH, 4 * H), jnp.float32)
    for c in range(4):
        we_blk = we_blk.at[c * OH:(c + 1) * OH, c * H:(c + 1) * H].set(we)
    be4 = jnp.tile(be, (1, 4))                                         # (1, 4H)

    # zero-padded ff_e weight/bias: full-K (4H rows) and lane-dense (128 cols)
    wfe_pad = jnp.zeros((4 * H, E_PAD), jnp.float32).at[:H, :3 * H].set(wfe)
    bfe_pad = jnp.zeros((1, E_PAD), jnp.float32).at[:, :3 * H].set(bfe)

    vmem = pl.BlockSpec(memory_space=pltpu.MemorySpace.VMEM)
    x_out, e_pad = pl.pallas_call(
        neural_arithmetic2_kernel,
        out_shape=(
            jax.ShapeDtypeStruct((B, 4 * H), jnp.float32),   # x  (128 lanes)
            jax.ShapeDtypeStruct((B, E_PAD), jnp.float32),   # e  (128 lanes, padded)
        ),
        in_specs=[vmem] * 11,
        out_specs=(vmem, vmem),
    )(targets, we_blk, be4, w1, b1, w2, b2, w3, b3, wfe_pad, bfe_pad)

    return x_out, e_pad[:, :3 * H]


# ---- deterministic parameter construction ----------------------------------
def make_params(key):
    ks = jax.random.split(key, 10)
    scale = 0.1
    we  = scale * jax.random.normal(ks[0], (OH, H), jnp.float32)
    be  = scale * jax.random.normal(ks[1], (1, H), jnp.float32)
    w1  = scale * jax.random.normal(ks[2], (L, 4 * H, 4 * H), jnp.float32)
    b1  = scale * jax.random.normal(ks[3], (L, 1, 4 * H), jnp.float32)
    w2  = scale * jax.random.normal(ks[4], (L, 4 * H, 4 * H), jnp.float32)
    b2  = scale * jax.random.normal(ks[5], (L, 1, 4 * H), jnp.float32)
    w3  = scale * jax.random.normal(ks[6], (L, 4 * H, 4 * H), jnp.float32)
    b3  = scale * jax.random.normal(ks[7], (L, 1, 4 * H), jnp.float32)
    wfe = scale * jax.random.normal(ks[8], (H, 3 * H), jnp.float32)
    bfe = scale * jax.random.normal(ks[9], (1, 3 * H), jnp.float32)
    return (we, be, w1, b1, w2, b2, w3, b3, wfe, bfe)


# ---- pure-JAX reference (mirrors the PyTorch forward) -----------------------
def ref_forward(idx, params):
    (we, be, w1, b1, w2, b2, w3, b3, wfe, bfe) = params
    oh = jax.nn.one_hot(idx, OH, dtype=jnp.float32)              # (B, 4, OH)
    emb = jnp.einsum("bto,oh->bth", oh, we) + be[0]              # (B, 4, H)
    h = emb.reshape(B, 4 * H)                                    # cat(w,x,y,z)
    for l in range(L):
        h = _act(h @ w1[l] + b1[l, 0])
    for l in range(L):
        h = _act(h @ w2[l] + b2[l, 0])
    e = h[:, 0:H]
    for l in range(L):
        h = h @ w3[l] + b3[l, 0]
        if l < L - 1:
            h = _act(h)
    e_out = _act(e @ wfe + bfe[0])
    return h, e_out


if __name__ == "__main__":
    key = jax.random.PRNGKey(0)
    kp, ki = jax.random.split(key)
    params = make_params(kp)
    # integer problem input: (B, 4) values in [0, OH)
    idx = jax.random.randint(ki, (B, 4), 0, OH, dtype=jnp.int32)

    x_out, e_out = jax.block_until_ready(neural_arithmetic2(idx, params))

    x_ref, e_ref = ref_forward(idx, params)
    assert x_out.shape == (B, 4 * H) and e_out.shape == (B, 3 * H)
    assert jnp.allclose(x_out, x_ref, rtol=1e-5, atol=1e-5)
    assert jnp.allclose(e_out, e_ref, rtol=1e-5, atol=1e-5)

    print("KERNEL_OK")
</pallas_src>

<mosaic_0001>
module attributes {stable_mosaic.version = 11 : i64} {
  func.func @neural_arithmetic2_kernel(%arg0: memref<8x64xi32, #tpu.memory_space<vmem>>, %arg1: memref<64x128xf32, #tpu.memory_space<vmem>>, %arg2: memref<1x128xf32, #tpu.memory_space<vmem>>, %arg3: memref<2x128x128xf32, #tpu.memory_space<vmem>>, %arg4: memref<2x1x128xf32, #tpu.memory_space<vmem>>, %arg5: memref<2x128x128xf32, #tpu.memory_space<vmem>>, %arg6: memref<2x1x128xf32, #tpu.memory_space<vmem>>, %arg7: memref<2x128x128xf32, #tpu.memory_space<vmem>>, %arg8: memref<2x1x128xf32, #tpu.memory_space<vmem>>, %arg9: memref<128x128xf32, #tpu.memory_space<vmem>>, %arg10: memref<1x128xf32, #tpu.memory_space<vmem>>, %arg11: memref<8x128xf32, #tpu.memory_space<vmem>>, %arg12: memref<8x128xf32, #tpu.memory_space<vmem>>) attributes {dimension_semantics = [], scalar_prefetch = 0 : i64, scratch_operands = 0 : i64, tpu.core_type = #tpu.core_type<tc>} {
    %0 = tpu.iota {dimensions = array<i32: 1>} : vector<8x64xi32>
    %c0 = arith.constant 0 : index
    %c0_0 = arith.constant 0 : index
    %1 = vector.load %arg0[%c0, %c0_0] : memref<8x64xi32, #tpu.memory_space<vmem>>, vector<8x64xi32>
    %2 = arith.cmpi eq, %0, %1 : vector<8x64xi32>
    %3 = arith.extui %2 : vector<8x64xi1> to vector<8x64xi32>
    %4 = arith.sitofp %3 : vector<8x64xi32> to vector<8x64xf32>
    %c0_1 = arith.constant 0 : index
    %c0_2 = arith.constant 0 : index
    %5 = vector.load %arg1[%c0_1, %c0_2] : memref<64x128xf32, #tpu.memory_space<vmem>>, vector<64x128xf32>
    %cst = arith.constant dense<0.000000e+00> : vector<8x128xf32>
    %6 = tpu.matmul %4, %5, %cst {dimension_numbers = #tpu.dot_dimension_numbers<[1], [0], [0], [1], [0, 0, 1, 1], [], []>} : vector<8x64xf32>, vector<64x128xf32>, vector<8x128xf32> -> vector<8x128xf32>
    %c0_3 = arith.constant 0 : index
    %c0_4 = arith.constant 0 : index
    %7 = vector.load %arg2[%c0_3, %c0_4] : memref<1x128xf32, #tpu.memory_space<vmem>>, vector<1x128xf32>
    %8 = vector.broadcast %7 : vector<1x128xf32> to vector<8x128xf32>
    %9 = arith.addf %6, %8 : vector<8x128xf32>
    %c0_5 = arith.constant 0 : index
    %c0_6 = arith.constant 0 : index
    %c0_7 = arith.constant 0 : index
    %10 = vector.load %arg3[%c0_5, %c0_6, %c0_7] : memref<2x128x128xf32, #tpu.memory_space<vmem>>, vector<1x128x128xf32>
    %11 = vector.shape_cast %10 : vector<1x128x128xf32> to vector<128x128xf32>
    %cst_8 = arith.constant dense<0.000000e+00> : vector<8x128xf32>
    %12 = tpu.matmul %9, %11, %cst_8 {dimension_numbers = #tpu.dot_dimension_numbers<[1], [0], [0], [1], [0, 0, 1, 1], [], []>} : vector<8x128xf32>, vector<128x128xf32>, vector<8x128xf32> -> vector<8x128xf32>
    %c0_9 = arith.constant 0 : index
    %c0_10 = arith.constant 0 : index
    %c0_11 = arith.constant 0 : index
    %13 = vector.load %arg4[%c0_9, %c0_10, %c0_11] : memref<2x1x128xf32, #tpu.memory_space<vmem>>, vector<1x1x128xf32>
    %14 = vector.shape_cast %13 : vector<1x1x128xf32> to vector<1x128xf32>
    %15 = vector.broadcast %14 : vector<1x128xf32> to vector<8x128xf32>
    %16 = arith.addf %12, %15 : vector<8x128xf32>
    %17 = math.tanh %16 : vector<8x128xf32>
    %c1 = arith.constant 1 : index
    %c0_12 = arith.constant 0 : index
    %c0_13 = arith.constant 0 : index
    %18 = vector.load %arg3[%c1, %c0_12, %c0_13] : memref<2x128x128xf32, #tpu.memory_space<vmem>>, vector<1x128x128xf32>
    %19 = vector.shape_cast %18 : vector<1x128x128xf32> to vector<128x128xf32>
    %cst_14 = arith.constant dense<0.000000e+00> : vector<8x128xf32>
    %20 = tpu.matmul %17, %19, %cst_14 {dimension_numbers = #tpu.dot_dimension_numbers<[1], [0], [0], [1], [0, 0, 1, 1], [], []>} : vector<8x128xf32>, vector<128x128xf32>, vector<8x128xf32> -> vector<8x128xf32>
    %c1_15 = arith.constant 1 : index
    %c0_16 = arith.constant 0 : index
    %c0_17 = arith.constant 0 : index
    %21 = vector.load %arg4[%c1_15, %c0_16, %c0_17] : memref<2x1x128xf32, #tpu.memory_space<vmem>>, vector<1x1x128xf32>
    %22 = vector.shape_cast %21 : vector<1x1x128xf32> to vector<1x128xf32>
    %23 = vector.broadcast %22 : vector<1x128xf32> to vector<8x128xf32>
    %24 = arith.addf %20, %23 : vector<8x128xf32>
    %25 = math.tanh %24 : vector<8x128xf32>
    %c0_18 = arith.constant 0 : index
    %c0_19 = arith.constant 0 : index
    %c0_20 = arith.constant 0 : index
    %26 = vector.load %arg5[%c0_18, %c0_19, %c0_20] : memref<2x128x128xf32, #tpu.memory_space<vmem>>, vector<1x128x128xf32>
    %27 = vector.shape_cast %26 : vector<1x128x128xf32> to vector<128x128xf32>
    %cst_21 = arith.constant dense<0.000000e+00> : vector<8x128xf32>
    %28 = tpu.matmul %25, %27, %cst_21 {dimension_numbers = #tpu.dot_dimension_numbers<[1], [0], [0], [1], [0, 0, 1, 1], [], []>} : vector<8x128xf32>, vector<128x128xf32>, vector<8x128xf32> -> vector<8x128xf32>
    %c0_22 = arith.constant 0 : index
    %c0_23 = arith.constant 0 : index
    %c0_24 = arith.constant 0 : index
    %29 = vector.load %arg6[%c0_22, %c0_23, %c0_24] : memref<2x1x128xf32, #tpu.memory_space<vmem>>, vector<1x1x128xf32>
    %30 = vector.shape_cast %29 : vector<1x1x128xf32> to vector<1x128xf32>
    %31 = vector.broadcast %30 : vector<1x128xf32> to vector<8x128xf32>
    %32 = arith.addf %28, %31 : vector<8x128xf32>
    %33 = math.tanh %32 : vector<8x128xf32>
    %c1_25 = arith.constant 1 : index
    %c0_26 = arith.constant 0 : index
    %c0_27 = arith.constant 0 : index
    %34 = vector.load %arg5[%c1_25, %c0_26, %c0_27] : memref<2x128x128xf32, #tpu.memory_space<vmem>>, vector<1x128x128xf32>
    %35 = vector.shape_cast %34 : vector<1x128x128xf32> to vector<128x128xf32>
    %cst_28 = arith.constant dense<0.000000e+00> : vector<8x128xf32>
    %36 = tpu.matmul %33, %35, %cst_28 {dimension_numbers = #tpu.dot_dimension_numbers<[1], [0], [0], [1], [0, 0, 1, 1], [], []>} : vector<8x128xf32>, vector<128x128xf32>, vector<8x128xf32> -> vector<8x128xf32>
    %c1_29 = arith.constant 1 : index
    %c0_30 = arith.constant 0 : index
    %c0_31 = arith.constant 0 : index
    %37 = vector.load %arg6[%c1_29, %c0_30, %c0_31] : memref<2x1x128xf32, #tpu.memory_space<vmem>>, vector<1x1x128xf32>
    %38 = vector.shape_cast %37 : vector<1x1x128xf32> to vector<1x128xf32>
    %39 = vector.broadcast %38 : vector<1x128xf32> to vector<8x128xf32>
    %40 = arith.addf %36, %39 : vector<8x128xf32>
    %41 = math.tanh %40 : vector<8x128xf32>
    %c0_32 = arith.constant 0 : index
    %c0_33 = arith.constant 0 : index
    %42 = vector.load %arg9[%c0_32, %c0_33] : memref<128x128xf32, #tpu.memory_space<vmem>>, vector<128x128xf32>
    %cst_34 = arith.constant dense<0.000000e+00> : vector<8x128xf32>
    %43 = tpu.matmul %41, %42, %cst_34 {dimension_numbers = #tpu.dot_dimension_numbers<[1], [0], [0], [1], [0, 0, 1, 1], [], []>} : vector<8x128xf32>, vector<128x128xf32>, vector<8x128xf32> -> vector<8x128xf32>
    %c0_35 = arith.constant 0 : index
    %c0_36 = arith.constant 0 : index
    %44 = vector.load %arg10[%c0_35, %c0_36] : memref<1x128xf32, #tpu.memory_space<vmem>>, vector<1x128xf32>
    %45 = vector.broadcast %44 : vector<1x128xf32> to vector<8x128xf32>
    %46 = arith.addf %43, %45 : vector<8x128xf32>
    %47 = math.tanh %46 : vector<8x128xf32>
    %c0_37 = arith.constant 0 : index
    %c0_38 = arith.constant 0 : index
    %48 = vector.load %arg12[%c0_37, %c0_38] : memref<8x128xf32, #tpu.memory_space<vmem>>, vector<8x128xf32>
    tpu.vector_store %arg12[%c0_37, %c0_38], %47 {strides = array<i32>} : memref<8x128xf32, #tpu.memory_space<vmem>>, vector<8x128xf32>,
    %c0_39 = arith.constant 0 : index
    %c0_40 = arith.constant 0 : index
    %c0_41 = arith.constant 0 : index
    %49 = vector.load %arg7[%c0_39, %c0_40, %c0_41] : memref<2x128x128xf32, #tpu.memory_space<vmem>>, vector<1x128x128xf32>
    %50 = vector.shape_cast %49 : vector<1x128x128xf32> to vector<128x128xf32>
    %cst_42 = arith.constant dense<0.000000e+00> : vector<8x128xf32>
    %51 = tpu.matmul %41, %50, %cst_42 {dimension_numbers = #tpu.dot_dimension_numbers<[1], [0], [0], [1], [0, 0, 1, 1], [], []>} : vector<8x128xf32>, vector<128x128xf32>, vector<8x128xf32> -> vector<8x128xf32>
    %c0_43 = arith.constant 0 : index
    %c0_44 = arith.constant 0 : index
    %c0_45 = arith.constant 0 : index
    %52 = vector.load %arg8[%c0_43, %c0_44, %c0_45] : memref<2x1x128xf32, #tpu.memory_space<vmem>>, vector<1x1x128xf32>
    %53 = vector.shape_cast %52 : vector<1x1x128xf32> to vector<1x128xf32>
    %54 = vector.broadcast %53 : vector<1x128xf32> to vector<8x128xf32>
    %55 = arith.addf %51, %54 : vector<8x128xf32>
    %56 = math.tanh %55 : vector<8x128xf32>
    %c1_46 = arith.constant 1 : index
    %c0_47 = arith.constant 0 : index
    %c0_48 = arith.constant 0 : index
    %57 = vector.load %arg7[%c1_46, %c0_47, %c0_48] : memref<2x128x128xf32, #tpu.memory_space<vmem>>, vector<1x128x128xf32>
    %58 = vector.shape_cast %57 : vector<1x128x128xf32> to vector<128x128xf32>
    %cst_49 = arith.constant dense<0.000000e+00> : vector<8x128xf32>
    %59 = tpu.matmul %56, %58, %cst_49 {dimension_numbers = #tpu.dot_dimension_numbers<[1], [0], [0], [1], [0, 0, 1, 1], [], []>} : vector<8x128xf32>, vector<128x128xf32>, vector<8x128xf32> -> vector<8x128xf32>
    %c1_50 = arith.constant 1 : index
    %c0_51 = arith.constant 0 : index
    %c0_52 = arith.constant 0 : index
    %60 = vector.load %arg8[%c1_50, %c0_51, %c0_52] : memref<2x1x128xf32, #tpu.memory_space<vmem>>, vector<1x1x128xf32>
    %61 = vector.shape_cast %60 : vector<1x1x128xf32> to vector<1x128xf32>
    %62 = vector.broadcast %61 : vector<1x128xf32> to vector<8x128xf32>
    %63 = arith.addf %59, %62 : vector<8x128xf32>
    %c0_53 = arith.constant 0 : index
    %c0_54 = arith.constant 0 : index
    %64 = vector.load %arg11[%c0_53, %c0_54] : memref<8x128xf32, #tpu.memory_space<vmem>>, vector<8x128xf32>
    tpu.vector_store %arg11[%c0_53, %c0_54], %63 {strides = array<i32>} : memref<8x128xf32, #tpu.memory_space<vmem>>, vector<8x128xf32>,
    return
  }
}

</mosaic_0001>

<llo_original>
// kernel: tpu_custom_call.1
$region0: #{tpu_custom_call.1}
  #allocation0 [shape = 'u32[]', space=smem, size = 0x4, offset = 0x4, fixed_abs, tag = 'smem constant byte address 0x4 - core index']
  #allocation1 [shape = 'u32[144,128]{1,0:T(1,128)}', space=vmem, size = 0x12000, scoped, tag = 'internal scratch']
  %s0 = inlined_call_operand.hbm [shape: s32[8,64], index: 0, kind: input, shape index: {}]
  %s1 = inlined_call_operand.hbm [shape: f32[64,128], index: 1, kind: input, shape index: {}]
  %s2 = inlined_call_operand.vmem [shape: f32[1,128], index: 2, kind: input, shape index: {}]
  %s3 = inlined_call_operand.hbm [shape: f32[2,128,128], index: 3, kind: input, shape index: {}]
  %s4 = inlined_call_operand.vmem [shape: f32[2,1,128], index: 4, kind: input, shape index: {}]
  %s5 = inlined_call_operand.hbm [shape: f32[2,128,128], index: 5, kind: input, shape index: {}]
  %s6 = inlined_call_operand.vmem [shape: f32[2,1,128], index: 6, kind: input, shape index: {}]
  %s7 = inlined_call_operand.hbm [shape: f32[2,128,128], index: 7, kind: input, shape index: {}]
  %s8 = inlined_call_operand.vmem [shape: f32[2,1,128], index: 8, kind: input, shape index: {}]
  %s9 = inlined_call_operand.hbm [shape: f32[128,128], index: 9, kind: input, shape index: {}]
  %s10 = inlined_call_operand.vmem [shape: f32[1,128], index: 10, kind: input, shape index: {}]
  %s11 = inlined_call_operand.hbm [shape: f32[8,128], index: 11, kind: output, shape index: {0}]
  %s12 = inlined_call_operand.hbm [shape: f32[8,128], index: 12, kind: output, shape index: {1}]
  %13 = xla_tuple %s11, %s12
  %s14 = sld [smem:[#allocation0]]
  $region86: #{tpu_custom_call.1} parent=0
    _
  %s16 = ssub.s32 1, %s14
  %s17 = scalar_select 0, %s16, %s14
  $region1: #{tpu_custom_call.1} parent=0
    #allocation2 [shape = 'u8[4096]{0}', space=vmem, size = 0x1000, scoped, tag = 'input window, operand 0, single buffered']
    #allocation3 [shape = 's32[1]{0}', space=sflag, size = 0x4, scoped, tag = 'scoped memory for tpu_custom_call.1']
    #allocation4 [shape = 's32[1]{0}', space=sflag, size = 0x4, scoped, tag = 'scoped memory for tpu_custom_call.1']
    #allocation5 [shape = 'u8[32768]{0}', space=vmem, size = 0x8000, scoped, tag = 'input window, operand 1, single buffered']
    #allocation6 [shape = 's32[1]{0}', space=sflag, size = 0x4, scoped, tag = 'scoped memory for tpu_custom_call.1']
    #allocation7 [shape = 'u8[131072]{0}', space=vmem, size = 0x20000, scoped, tag = 'input window, operand 3, single buffered']
    #allocation8 [shape = 'u8[131072]{0}', space=vmem, size = 0x20000, scoped, tag = 'input window, operand 5, single buffered']
    #allocation9 [shape = 's32[1]{0}', space=sflag, size = 0x4, scoped, tag = 'scoped memory for tpu_custom_call.1']
    #allocation10 [shape = 'u8[131072]{0}', space=vmem, size = 0x20000, scoped, tag = 'input window, operand 7, single buffered']
    #allocation11 [shape = 'u8[65536]{0}', space=vmem, size = 0x10000, scoped, tag = 'input window, operand 9, single buffered']
    #allocation12 [shape = 's32[1]{0}', space=sflag, size = 0x4, scoped, tag = 'scoped memory for tpu_custom_call.1']
    #allocation13 [shape = 'u8[4096]{0}', space=vmem, size = 0x1000, scoped, tag = 'output window, operand 0, single buffered']
    #allocation14 [shape = 'u8[4096]{0}', space=vmem, size = 0x1000, scoped, tag = 'output window, operand 1, single buffered']
    #allocation15 [shape = 's32[1]{0}', space=sflag, size = 0x4, scoped, tag = 'scoped memory for tpu_custom_call.1']
    %18 = vsyncpa [#allocation3], 0
    %19 = vsyncpa [#allocation6], 0
    %20 = vsyncpa [#allocation9], 0
    %21 = vsyncpa [#allocation12], 0
    %22 = vsyncpa [#allocation4], 0
    %23 = vsyncpa [#allocation15], 0
    // Predicated region
    $region2: #{tpu_custom_call.1} parent=1 // pred_check
      _
    $region3: #{tpu_custom_call.1} parent=1 // pred_check_branch
      %25 = sbr.rel (0) target = $region5
    $region4: #{tpu_custom_call.1} parent=1 // pred_region
      %s27 = ssub.s32 128, 128
      %28 = vsyncadd [#allocation3], %s27
      %s30 = sshll.u32 [#allocation2], 4
      %s31 = int_to_ptr.vmem [resolvable:$true] %s30
      %33 = dma.hbm_to_vmem [thread:$0]  %s0, 128, %s31, [#allocation3]
    $region5: #{tpu_custom_call.1} parent=1 // pred_fallthru
      _
    // Predicated region
    $region6: #{tpu_custom_call.1} parent=1 // pred_check
      _
    $region7: #{tpu_custom_call.1} parent=1 // pred_check_branch
      %35 = sbr.rel (0) target = $region9
    $region8: #{tpu_custom_call.1} parent=1 // pred_region
      %s37 = ssub.s32 1024, 1024
      %38 = vsyncadd [#allocation6], %s37
      %s39 = sshll.u32 [#allocation5], 4
      %s40 = int_to_ptr.vmem [resolvable:$true] %s39
      %45 = dma.hbm_to_vmem [thread:$0]  %s1, 1024, %s40, [#allocation6], 128, 128, 8
    $region9: #{tpu_custom_call.1} parent=1 // pred_fallthru
      _
    // Predicated region
    $region10: #{tpu_custom_call.1} parent=1 // pred_check
      _
    $region11: #{tpu_custom_call.1} parent=1 // pred_check_branch
      %47 = sbr.rel (0) target = $region13
    $region12: #{tpu_custom_call.1} parent=1 // pred_region
      _
    $region13: #{tpu_custom_call.1} parent=1 // pred_fallthru
      _
    // Predicated region
    $region14: #{tpu_custom_call.1} parent=1 // pred_check
      _
    $region15: #{tpu_custom_call.1} parent=1 // pred_check_branch
      %49 = sbr.rel (0) target = $region17
    $region16: #{tpu_custom_call.1} parent=1 // pred_region
      %s51 = ssub.s32 4096, 4096
      %52 = vsyncadd [#allocation6], %s51
      %s53 = sshll.u32 [#allocation7], 4
      %s54 = int_to_ptr.vmem [resolvable:$true] %s53
      %59 = dma.hbm_to_vmem [thread:$0]  %s3, 4096, %s54, [#allocation6], 128, 128, 8
    $region17: #{tpu_custom_call.1} parent=1 // pred_fallthru
      _
    // Predicated region
    $region18: #{tpu_custom_call.1} parent=1 // pred_check
      _
    $region19: #{tpu_custom_call.1} parent=1 // pred_check_branch
      %61 = sbr.rel (0) target = $region21
    $region20: #{tpu_custom_call.1} parent=1 // pred_region
      _
    $region21: #{tpu_custom_call.1} parent=1 // pred_fallthru
      _
    // Predicated region
    $region22: #{tpu_custom_call.1} parent=1 // pred_check
      _
    $region23: #{tpu_custom_call.1} parent=1 // pred_check_branch
      %63 = sbr.rel (0) target = $region25
    $region24: #{tpu_custom_call.1} parent=1 // pred_region
      %s65 = ssub.s32 4096, 4096
      %66 = vsyncadd [#allocation9], %s65
      %s67 = sshll.u32 [#allocation8], 4
      %s68 = int_to_ptr.vmem [resolvable:$true] %s67
      %73 = dma.hbm_to_vmem [thread:$0]  %s5, 4096, %s68, [#allocation9], 128, 128, 8
    $region25: #{tpu_custom_call.1} parent=1 // pred_fallthru
      _
    // Predicated region
    $region26: #{tpu_custom_call.1} parent=1 // pred_check
      _
    $region27: #{tpu_custom_call.1} parent=1 // pred_check_branch
      %75 = sbr.rel (0) target = $region29
    $region28: #{tpu_custom_call.1} parent=1 // pred_region
      _
    $region29: #{tpu_custom_call.1} parent=1 // pred_fallthru
      _
    // Predicated region
    $region30: #{tpu_custom_call.1} parent=1 // pred_check
      _
    $region31: #{tpu_custom_call.1} parent=1 // pred_check_branch
      %77 = sbr.rel (0) target = $region33
    $region32: #{tpu_custom_call.1} parent=1 // pred_region
      %s79 = ssub.s32 4096, 4096
      %80 = vsyncadd [#allocation9], %s79
      %s81 = sshll.u32 [#allocation10], 4
      %s82 = int_to_ptr.vmem [resolvable:$true] %s81
      %87 = dma.hbm_to_vmem [thread:$0]  %s7, 4096, %s82, [#allocation9], 128, 128, 8
    $region33: #{tpu_custom_call.1} parent=1 // pred_fallthru
      _
    // Predicated region
    $region34: #{tpu_custom_call.1} parent=1 // pred_check
      _
    $region35: #{tpu_custom_call.1} parent=1 // pred_check_branch
      %89 = sbr.rel (0) target = $region37
    $region36: #{tpu_custom_call.1} parent=1 // pred_region
      _
    $region37: #{tpu_custom_call.1} parent=1 // pred_fallthru
      _
    // Predicated region
    $region38: #{tpu_custom_call.1} parent=1 // pred_check
      _
    $region39: #{tpu_custom_call.1} parent=1 // pred_check_branch
      %91 = sbr.rel (0) target = $region41
    $region40: #{tpu_custom_call.1} parent=1 // pred_region
      %s93 = ssub.s32 2048, 2048
      %94 = vsyncadd [#allocation12], %s93
      %s95 = sshll.u32 [#allocation11], 4
      %s96 = int_to_ptr.vmem [resolvable:$true] %s95
      %101 = dma.hbm_to_vmem [thread:$0]  %s9, 2048, %s96, [#allocation12], 128, 128, 8
    $region41: #{tpu_custom_call.1} parent=1 // pred_fallthru
      _
    // Predicated region
    $region42: #{tpu_custom_call.1} parent=1 // pred_check
      _
    $region43: #{tpu_custom_call.1} parent=1 // pred_check_branch
      %103 = sbr.rel (0) target = $region45
    $region44: #{tpu_custom_call.1} parent=1 // pred_region
      _
    $region45: #{tpu_custom_call.1} parent=1 // pred_fallthru
      _
    // Predicated region
    $region46: #{tpu_custom_call.1} parent=1 // pred_check
      _
    $region47: #{tpu_custom_call.1} parent=1 // pred_check_branch
      %105 = sbr.rel (0) target = $region49
    $region48: #{tpu_custom_call.1} parent=1 // pred_region
      %106 = dma.done [#allocation3], 128
    $region49: #{tpu_custom_call.1} parent=1 // pred_fallthru
      _
    // Predicated region
    $region50: #{tpu_custom_call.1} parent=1 // pred_check
      _
    $region51: #{tpu_custom_call.1} parent=1 // pred_check_branch
      %108 = sbr.rel (0) target = $region53
    $region52: #{tpu_custom_call.1} parent=1 // pred_region
      %109 = dma.done [#allocation6], 1024
    $region53: #{tpu_custom_call.1} parent=1 // pred_fallthru
      _
    // Predicated region
    $region54: #{tpu_custom_call.1} parent=1 // pred_check
      _
    $region55: #{tpu_custom_call.1} parent=1 // pred_check_branch
      %111 = sbr.rel (0) target = $region57
    $region56: #{tpu_custom_call.1} parent=1 // pred_region
      %112 = dma.done [#allocation6], 4096
    $region57: #{tpu_custom_call.1} parent=1 // pred_fallthru
      _
    // Predicated region
    $region58: #{tpu_custom_call.1} parent=1 // pred_check
      _
    $region59: #{tpu_custom_call.1} parent=1 // pred_check_branch
      %114 = sbr.rel (0) target = $region61
    $region60: #{tpu_custom_call.1} parent=1 // pred_region
      %115 = dma.done [#allocation9], 4096
    $region61: #{tpu_custom_call.1} parent=1 // pred_fallthru
      _
    // Predicated region
    $region62: #{tpu_custom_call.1} parent=1 // pred_check
      _
    $region63: #{tpu_custom_call.1} parent=1 // pred_check_branch
      %117 = sbr.rel (0) target = $region65
    $region64: #{tpu_custom_call.1} parent=1 // pred_region
      %118 = dma.done [#allocation9], 4096
    $region65: #{tpu_custom_call.1} parent=1 // pred_fallthru
      _
    // Predicated region
    $region66: #{tpu_custom_call.1} parent=1 // pred_check
      _
    $region67: #{tpu_custom_call.1} parent=1 // pred_check_branch
      %120 = sbr.rel (0) target = $region69
    $region68: #{tpu_custom_call.1} parent=1 // pred_region
      %121 = dma.done [#allocation12], 2048
    $region69: #{tpu_custom_call.1} parent=1 // pred_fallthru
      _
    %v122 = vlaneseq
    %v123 = vand.u32 %v122, 127
    %v124 = vld [vmem:[#allocation2] sm:$0xff]
    %vm125 = vcmp.eq.s32.totalorder %v123, %v124
    %v126 = vsel %vm125, 1, 0
    %v127 = vcvt.s32.f32 %v126
    %v128 = vld [vmem:[#allocation5] sm:$0xff]
    %v129 = vld [vmem:[#allocation5 + $0x8] sm:$0xff]
    %v130 = vld [vmem:[#allocation5 + $0x10] sm:$0xff]
    %v131 = vld [vmem:[#allocation5 + $0x18] sm:$0xff]
    %v132 = vld [vmem:[#allocation5 + $0x20] sm:$0xff]
    %v133 = vld [vmem:[#allocation5 + $0x28] sm:$0xff]
    %v134 = vld [vmem:[#allocation5 + $0x30] sm:$0xff]
    %v135 = vld [vmem:[#allocation5 + $0x38] sm:$0xff]
    %v136 = vld [vmem:[%s2] sm:$0x1]
    %v138 = vlaneseq
    %v139 = vshrl.u32 %v138, 7
    %v140 = vsub.s32 0, %v139
    %v141 = vrot.slane %v136, %v140
    %vm143 = vcmask 523264
    %v145 = vsel %vm143, %v127, 0
    %147 = vmatprep.subr.mxu0 0.0
    %148 = vmatpush1.msra.mxu0 %v128
    %149 = vmatprep.subr.mxu0 0.0
    %150 = vmatpush1.msra.mxu0 %v129
    %151 = vmatprep.subr.mxu0 0.0
    %152 = vmatpush1.msra.mxu0 %v130
    %153 = vmatprep.subr.mxu0 0.0
    %154 = vmatpush1.msra.mxu0 %v131
    %155 = vmatprep.subr.mxu0 0.0
    %156 = vmatpush1.msra.mxu0 %v132
    %157 = vmatprep.subr.mxu0 0.0
    %158 = vmatpush1.msra.mxu0 %v133
    %159 = vmatprep.subr.mxu0 0.0
    %160 = vmatpush1.msra.mxu0 %v134
    %161 = vmatprep.subr.mxu0 0.0
    %162 = vmatpush1.msra.mxu0 %v135
    %163 = vmatprep.subr.mxu0 0.0
    %164 = vmatpush1.msra.mxu0 0.0
    %165 = vmatprep.subr.mxu0 0.0
    %166 = vmatpush1.msra.mxu0 0.0
    %167 = vmatprep.subr.mxu0 0.0
    %168 = vmatpush1.msra.mxu0 0.0
    %169 = vmatprep.subr.mxu0 0.0
    %170 = vmatpush1.msra.mxu0 0.0
    %171 = vmatprep.subr.mxu0 0.0
    %172 = vmatpush1.msra.mxu0 0.0
    %173 = vmatprep.subr.mxu0 0.0
    %174 = vmatpush1.msra.mxu0 0.0
    %175 = vmatprep.subr.mxu0 0.0
    %176 = vmatpush1.msra.mxu0 0.0
    %177 = vmatprep.subr.mxu0 0.0
    %178 = vmatpush1.msra.mxu0 0.0
    %179 = vmatprep.subr.mxu0 0.0
    %180 = vmatpush1.msra.mxu0 0.0
    %181 = vmatprep.subr.mxu0 0.0
    %182 = vmatpush1.msra.mxu0 0.0
    %183 = vmatprep.subr.mxu0 0.0
    %184 = vmatpush1.msra.mxu0 0.0
    %185 = vmatprep.subr.mxu0 0.0
    %186 = vmatpush1.msra.mxu0 0.0
    %187 = vmatprep.subr.mxu0 0.0
    %188 = vmatpush1.msra.mxu0 0.0
    %189 = vmatprep.subr.mxu0 0.0
    %190 = vmatpush1.msra.mxu0 0.0
    %191 = vmatprep.subr.mxu0 0.0
    %192 = vmatpush1.msra.mxu0 0.0
    %193 = vmatprep.subr.mxu0 0.0
    %194 = vmatpush1.msra.mxu0 0.0
    %195 = vmatprep.subr.mxu0 0.0
    %196 = vmatpush1.msra.mxu0 0.0
    %197 = vmatprep.subr.mxu0 0.0
    %198 = vmatpush1.msra.mxu0 0.0
    %199 = vmatprep.subr.mxu0 0.0
    %200 = vmatpush1.msra.mxu0 0.0
    %201 = vmatprep.subr.mxu0 0.0
    %202 = vmatpush1.msra.mxu0 0.0
    %203 = vmatprep.subr.mxu0 0.0
    %204 = vmatpush1.msra.mxu0 0.0
    %205 = vmatprep.subr.mxu0 0.0
    %206 = vmatpush1.msra.mxu0 0.0
    %207 = vmatprep.subr.mxu0 0.0
    %208 = vmatpush1.msra.mxu0 0.0
    %209 = vmatprep.subr.mxu0 0.0
    %210 = vmatpush1.msra.mxu0 0.0
    %211 = vmatprep.mubr.f32.mxu0 0.0
    %212 = vmatmul.mubr.f32.gmra.mrb[0].mxu0 %v145
    %v213 = vpop.f32.mrb[0].mxu0
    %v214 = vadd.f32 %v141, %v213
    %v215 = vpop.f32.mrb[0].mxu0
    %216 = vdwg.mxu0
    %v217 = vld [vmem:[#allocation7] sm:$0xff]
    %v218 = vld [vmem:[#allocation7 + $0x8] sm:$0xff]
    %v219 = vld [vmem:[#allocation7 + $0x10] sm:$0xff]
    %v220 = vld [vmem:[#allocation7 + $0x18] sm:$0xff]
    %v221 = vld [vmem:[#allocation7 + $0x20] sm:$0xff]
    %v222 = vld [vmem:[#allocation7 + $0x28] sm:$0xff]
    %v223 = vld [vmem:[#allocation7 + $0x30] sm:$0xff]
    %v224 = vld [vmem:[#allocation7 + $0x38] sm:$0xff]
    %v225 = vld [vmem:[#allocation7 + $0x40] sm:$0xff]
    %v226 = vld [vmem:[#allocation7 + $0x48] sm:$0xff]
    %v227 = vld [vmem:[#allocation7 + $0x50] sm:$0xff]
    %v228 = vld [vmem:[#allocation7 + $0x58] sm:$0xff]
    %v229 = vld [vmem:[#allocation7 + $0x60] sm:$0xff]
    %v230 = vld [vmem:[#allocation7 + $0x68] sm:$0xff]
    %v231 = vld [vmem:[#allocation7 + $0x70] sm:$0xff]
    %v232 = vld [vmem:[#allocation7 + $0x78] sm:$0xff]
    %v233 = vld [vmem:[%s4] sm:$0x1]
    %v235 = vlaneseq
    %v236 = vshrl.u32 %v235, 7
    %v237 = vsub.s32 0, %v236
    %v238 = vrot.slane %v233, %v237
    %240 = vmatprep.subr.mxu0 0.0
    %241 = vmatpush1.msra.mxu0 %v217
    %242 = vmatprep.subr.mxu0 0.0
    %243 = vmatpush1.msra.mxu0 %v218
    %244 = vmatprep.subr.mxu0 0.0
    %245 = vmatpush1.msra.mxu0 %v219
    %246 = vmatprep.subr.mxu0 0.0
    %247 = vmatpush1.msra.mxu0 %v220
    %248 = vmatprep.subr.mxu0 0.0
    %249 = vmatpush1.msra.mxu0 %v221
    %250 = vmatprep.subr.mxu0 0.0
    %251 = vmatpush1.msra.mxu0 %v222
    %252 = vmatprep.subr.mxu0 0.0
    %253 = vmatpush1.msra.mxu0 %v223
    %254 = vmatprep.subr.mxu0 0.0
    %255 = vmatpush1.msra.mxu0 %v224
    %256 = vmatprep.subr.mxu0 0.0
    %257 = vmatpush1.msra.mxu0 %v225
    %258 = vmatprep.subr.mxu0 0.0
    %259 = vmatpush1.msra.mxu0 %v226
    %260 = vmatprep.subr.mxu0 0.0
    %261 = vmatpush1.msra.mxu0 %v227
    %262 = vmatprep.subr.mxu0 0.0
    %263 = vmatpush1.msra.mxu0 %v228
    %264 = vmatprep.subr.mxu0 0.0
    %265 = vmatpush1.msra.mxu0 %v229
    %266 = vmatprep.subr.mxu0 0.0
    %267 = vmatpush1.msra.mxu0 %v230
    %268 = vmatprep.subr.mxu0 0.0
    %269 = vmatpush1.msra.mxu0 %v231
    %270 = vmatprep.subr.mxu0 0.0
    %271 = vmatpush1.msra.mxu0 %v232
    %272 = vmatprep.subr.mxu0 0.0
    %273 = vmatpush1.msra.mxu0 0.0
    %274 = vmatprep.subr.mxu0 0.0
    %275 = vmatpush1.msra.mxu0 0.0
    %276 = vmatprep.subr.mxu0 0.0
    %277 = vmatpush1.msra.mxu0 0.0
    %278 = vmatprep.subr.mxu0 0.0
    %279 = vmatpush1.msra.mxu0 0.0
    %280 = vmatprep.subr.mxu0 0.0
    %281 = vmatpush1.msra.mxu0 0.0
    %282 = vmatprep.subr.mxu0 0.0
    %283 = vmatpush1.msra.mxu0 0.0
    %284 = vmatprep.subr.mxu0 0.0
    %285 = vmatpush1.msra.mxu0 0.0
    %286 = vmatprep.subr.mxu0 0.0
    %287 = vmatpush1.msra.mxu0 0.0
    %288 = vmatprep.subr.mxu0 0.0
    %289 = vmatpush1.msra.mxu0 0.0
    %290 = vmatprep.subr.mxu0 0.0
    %291 = vmatpush1.msra.mxu0 0.0
    %292 = vmatprep.subr.mxu0 0.0
    %293 = vmatpush1.msra.mxu0 0.0
    %294 = vmatprep.subr.mxu0 0.0
    %295 = vmatpush1.msra.mxu0 0.0
    %296 = vmatprep.subr.mxu0 0.0
    %297 = vmatpush1.msra.mxu0 0.0
    %298 = vmatprep.subr.mxu0 0.0
    %299 = vmatpush1.msra.mxu0 0.0
    %300 = vmatprep.subr.mxu0 0.0
    %301 = vmatpush1.msra.mxu0 0.0
    %302 = vmatprep.subr.mxu0 0.0
    %303 = vmatpush1.msra.mxu0 0.0
    %304 = vmatprep.mubr.f32.mxu0 0.0
    %305 = vmatmul.mubr.f32.gmra.mrb[0].mxu0 %v214
    %v306 = vpop.f32.mrb[0].mxu0
    %v307 = vadd.f32 %v238, %v306
    %v308 = vpop.f32.mrb[0].mxu0
    %309 = vdwg.mxu0
    %v310 = vtanh.pop %v307
    %s311 = scalar_lea.vmem [#allocation7], 128
    %v312 = vld [vmem:[%s311] sm:$0xff]
    %v313 = vld [vmem:[%s311 + $0x8] sm:$0xff]
    %v314 = vld [vmem:[%s311 + $0x10] sm:$0xff]
    %v315 = vld [vmem:[%s311 + $0x18] sm:$0xff]
    %v316 = vld [vmem:[%s311 + $0x20] sm:$0xff]
    %v317 = vld [vmem:[%s311 + $0x28] sm:$0xff]
    %v318 = vld [vmem:[%s311 + $0x30] sm:$0xff]
    %v319 = vld [vmem:[%s311 + $0x38] sm:$0xff]
    %v320 = vld [vmem:[%s311 + $0x40] sm:$0xff]
    %v321 = vld [vmem:[%s311 + $0x48] sm:$0xff]
    %v322 = vld [vmem:[%s311 + $0x50] sm:$0xff]
    %v323 = vld [vmem:[%s311 + $0x58] sm:$0xff]
    %v324 = vld [vmem:[%s311 + $0x60] sm:$0xff]
    %v325 = vld [vmem:[%s311 + $0x68] sm:$0xff]
    %v326 = vld [vmem:[%s311 + $0x70] sm:$0xff]
    %v327 = vld [vmem:[%s311 + $0x78] sm:$0xff]
    %s328 = scalar_lea.vmem %s4, 1
    %v329 = vld [vmem:[%s328] sm:$0x1]
    %v331 = vlaneseq
    %v332 = vshrl.u32 %v331, 7
    %v333 = vsub.s32 0, %v332
    %v334 = vrot.slane %v329, %v333
    %336 = vmatprep.subr.mxu0 0.0
    %337 = vmatpush1.msra.mxu0 %v312
    %338 = vmatprep.subr.mxu0 0.0
    %339 = vmatpush1.msra.mxu0 %v313
    %340 = vmatprep.subr.mxu0 0.0
    %341 = vmatpush1.msra.mxu0 %v314
    %342 = vmatprep.subr.mxu0 0.0
    %343 = vmatpush1.msra.mxu0 %v315
    %344 = vmatprep.subr.mxu0 0.0
    %345 = vmatpush1.msra.mxu0 %v316
    %346 = vmatprep.subr.mxu0 0.0
    %347 = vmatpush1.msra.mxu0 %v317
    %348 = vmatprep.subr.mxu0 0.0
    %349 = vmatpush1.msra.mxu0 %v318
    %350 = vmatprep.subr.mxu0 0.0
    %351 = vmatpush1.msra.mxu0 %v319
    %352 = vmatprep.subr.mxu0 0.0
    %353 = vmatpush1.msra.mxu0 %v320
    %354 = vmatprep.subr.mxu0 0.0
    %355 = vmatpush1.msra.mxu0 %v321
    %356 = vmatprep.subr.mxu0 0.0
    %357 = vmatpush1.msra.mxu0 %v322
    %358 = vmatprep.subr.mxu0 0.0
    %359 = vmatpush1.msra.mxu0 %v323
    %360 = vmatprep.subr.mxu0 0.0
    %361 = vmatpush1.msra.mxu0 %v324
    %362 = vmatprep.subr.mxu0 0.0
    %363 = vmatpush1.msra.mxu0 %v325
    %364 = vmatprep.subr.mxu0 0.0
    %365 = vmatpush1.msra.mxu0 %v326
    %366 = vmatprep.subr.mxu0 0.0
    %367 = vmatpush1.msra.mxu0 %v327
    %368 = vmatprep.subr.mxu0 0.0
    %369 = vmatpush1.msra.mxu0 0.0
    %370 = vmatprep.subr.mxu0 0.0
    %371 = vmatpush1.msra.mxu0 0.0
    %372 = vmatprep.subr.mxu0 0.0
    %373 = vmatpush1.msra.mxu0 0.0
    %374 = vmatprep.subr.mxu0 0.0
    %375 = vmatpush1.msra.mxu0 0.0
    %376 = vmatprep.subr.mxu0 0.0
    %377 = vmatpush1.msra.mxu0 0.0
    %378 = vmatprep.subr.mxu0 0.0
    %379 = vmatpush1.msra.mxu0 0.0
    %380 = vmatprep.subr.mxu0 0.0
    %381 = vmatpush1.msra.mxu0 0.0
    %382 = vmatprep.subr.mxu0 0.0
    %383 = vmatpush1.msra.mxu0 0.0
    %384 = vmatprep.subr.mxu0 0.0
    %385 = vmatpush1.msra.mxu0 0.0
    %386 = vmatprep.subr.mxu0 0.0
    %387 = vmatpush1.msra.mxu0 0.0
    %388 = vmatprep.subr.mxu0 0.0
    %389 = vmatpush1.msra.mxu0 0.0
    %390 = vmatprep.subr.mxu0 0.0
    %391 = vmatpush1.msra.mxu0 0.0
    %392 = vmatprep.subr.mxu0 0.0
    %393 = vmatpush1.msra.mxu0 0.0
    %394 = vmatprep.subr.mxu0 0.0
    %395 = vmatpush1.msra.mxu0 0.0
    %396 = vmatprep.subr.mxu0 0.0
    %397 = vmatpush1.msra.mxu0 0.0
    %398 = vmatprep.subr.mxu0 0.0
    %399 = vmatpush1.msra.mxu0 0.0
    %400 = vmatprep.mubr.f32.mxu0 0.0
    %401 = vmatmul.mubr.f32.gmra.mrb[0].mxu0 %v310
    %v402 = vpop.f32.mrb[0].mxu0
    %v403 = vadd.f32 %v334, %v402
    %v404 = vpop.f32.mrb[0].mxu0
    %405 = vdwg.mxu0
    %v406 = vtanh.pop %v403
    %v407 = vld [vmem:[#allocation8] sm:$0xff]
    %v408 = vld [vmem:[#allocation8 + $0x8] sm:$0xff]
    %v409 = vld [vmem:[#allocation8 + $0x10] sm:$0xff]
    %v410 = vld [vmem:[#allocation8 + $0x18] sm:$0xff]
    %v411 = vld [vmem:[#allocation8 + $0x20] sm:$0xff]
    %v412 = vld [vmem:[#allocation8 + $0x28] sm:$0xff]
    %v413 = vld [vmem:[#allocation8 + $0x30] sm:$0xff]
    %v414 = vld [vmem:[#allocation8 + $0x38] sm:$0xff]
    %v415 = vld [vmem:[#allocation8 + $0x40] sm:$0xff]
    %v416 = vld [vmem:[#allocation8 + $0x48] sm:$0xff]
    %v417 = vld [vmem:[#allocation8 + $0x50] sm:$0xff]
    %v418 = vld [vmem:[#allocation8 + $0x58] sm:$0xff]
    %v419 = vld [vmem:[#allocation8 + $0x60] sm:$0xff]
    %v420 = vld [vmem:[#allocation8 + $0x68] sm:$0xff]
    %v421 = vld [vmem:[#allocation8 + $0x70] sm:$0xff]
    %v422 = vld [vmem:[#allocation8 + $0x78] sm:$0xff]
    %v423 = vld [vmem:[%s6] sm:$0x1]
    %v425 = vlaneseq
    %v426 = vshrl.u32 %v425, 7
    %v427 = vsub.s32 0, %v426
    %v428 = vrot.slane %v423, %v427
    %430 = vmatprep.subr.mxu0 0.0
    %431 = vmatpush1.msra.mxu0 %v407
    %432 = vmatprep.subr.mxu0 0.0
    %433 = vmatpush1.msra.mxu0 %v408
    %434 = vmatprep.subr.mxu0 0.0
    %435 = vmatpush1.msra.mxu0 %v409
    %436 = vmatprep.subr.mxu0 0.0
    %437 = vmatpush1.msra.mxu0 %v410
    %438 = vmatprep.subr.mxu0 0.0
    %439 = vmatpush1.msra.mxu0 %v411
    %440 = vmatprep.subr.mxu0 0.0
    %441 = vmatpush1.msra.mxu0 %v412
    %442 = vmatprep.subr.mxu0 0.0
    %443 = vmatpush1.msra.mxu0 %v413
    %444 = vmatprep.subr.mxu0 0.0
    %445 = vmatpush1.msra.mxu0 %v414
    %446 = vmatprep.subr.mxu0 0.0
    %447 = vmatpush1.msra.mxu0 %v415
    %448 = vmatprep.subr.mxu0 0.0
    %449 = vmatpush1.msra.mxu0 %v416
    %450 = vmatprep.subr.mxu0 0.0
    %451 = vmatpush1.msra.mxu0 %v417
    %452 = vmatprep.subr.mxu0 0.0
    %453 = vmatpush1.msra.mxu0 %v418
    %454 = vmatprep.subr.mxu0 0.0
    %455 = vmatpush1.msra.mxu0 %v419
    %456 = vmatprep.subr.mxu0 0.0
    %457 = vmatpush1.msra.mxu0 %v420
    %458 = vmatprep.subr.mxu0 0.0
    %459 = vmatpush1.msra.mxu0 %v421
    %460 = vmatprep.subr.mxu0 0.0
    %461 = vmatpush1.msra.mxu0 %v422
    %462 = vmatprep.subr.mxu0 0.0
    %463 = vmatpush1.msra.mxu0 0.0
    %464 = vmatprep.subr.mxu0 0.0
    %465 = vmatpush1.msra.mxu0 0.0
    %466 = vmatprep.subr.mxu0 0.0
    %467 = vmatpush1.msra.mxu0 0.0
    %468 = vmatprep.subr.mxu0 0.0
    %469 = vmatpush1.msra.mxu0 0.0
    %470 = vmatprep.subr.mxu0 0.0
    %471 = vmatpush1.msra.mxu0 0.0
    %472 = vmatprep.subr.mxu0 0.0
    %473 = vmatpush1.msra.mxu0 0.0
    %474 = vmatprep.subr.mxu0 0.0
    %475 = vmatpush1.msra.mxu0 0.0
    %476 = vmatprep.subr.mxu0 0.0
    %477 = vmatpush1.msra.mxu0 0.0
    %478 = vmatprep.subr.mxu0 0.0
    %479 = vmatpush1.msra.mxu0 0.0
    %480 = vmatprep.subr.mxu0 0.0
    %481 = vmatpush1.msra.mxu0 0.0
    %482 = vmatprep.subr.mxu0 0.0
    %483 = vmatpush1.msra.mxu0 0.0
    %484 = vmatprep.subr.mxu0 0.0
    %485 = vmatpush1.msra.mxu0 0.0
    %486 = vmatprep.subr.mxu0 0.0
    %487 = vmatpush1.msra.mxu0 0.0
    %488 = vmatprep.subr.mxu0 0.0
    %489 = vmatpush1.msra.mxu0 0.0
    %490 = vmatprep.subr.mxu0 0.0
    %491 = vmatpush1.msra.mxu0 0.0
    %492 = vmatprep.subr.mxu0 0.0
    %493 = vmatpush1.msra.mxu0 0.0
    %494 = vmatprep.mubr.f32.mxu0 0.0
    %495 = vmatmul.mubr.f32.gmra.mrb[0].mxu0 %v406
    %v496 = vpop.f32.mrb[0].mxu0
    %v497 = vadd.f32 %v428, %v496
    %v498 = vpop.f32.mrb[0].mxu0
    %499 = vdwg.mxu0
    %v500 = vtanh.pop %v497
    %s501 = scalar_lea.vmem [#allocation8], 128
    %v502 = vld [vmem:[%s501] sm:$0xff]
    %v503 = vld [vmem:[%s501 + $0x8] sm:$0xff]
    %v504 = vld [vmem:[%s501 + $0x10] sm:$0xff]
    %v505 = vld [vmem:[%s501 + $0x18] sm:$0xff]
    %v506 = vld [vmem:[%s501 + $0x20] sm:$0xff]
    %v507 = vld [vmem:[%s501 + $0x28] sm:$0xff]
    %v508 = vld [vmem:[%s501 + $0x30] sm:$0xff]
    %v509 = vld [vmem:[%s501 + $0x38] sm:$0xff]
    %v510 = vld [vmem:[%s501 + $0x40] sm:$0xff]
    %v511 = vld [vmem:[%s501 + $0x48] sm:$0xff]
    %v512 = vld [vmem:[%s501 + $0x50] sm:$0xff]
    %v513 = vld [vmem:[%s501 + $0x58] sm:$0xff]
    %v514 = vld [vmem:[%s501 + $0x60] sm:$0xff]
    %v515 = vld [vmem:[%s501 + $0x68] sm:$0xff]
    %v516 = vld [vmem:[%s501 + $0x70] sm:$0xff]
    %v517 = vld [vmem:[%s501 + $0x78] sm:$0xff]
    %s518 = scalar_lea.vmem %s6, 1
    %v519 = vld [vmem:[%s518] sm:$0x1]
    %v521 = vlaneseq
    %v522 = vshrl.u32 %v521, 7
    %v523 = vsub.s32 0, %v522
    %v524 = vrot.slane %v519, %v523
    %526 = vmatprep.subr.mxu0 0.0
    %527 = vmatpush1.msra.mxu0 %v502
    %528 = vmatprep.subr.mxu0 0.0
    %529 = vmatpush1.msra.mxu0 %v503
    %530 = vmatprep.subr.mxu0 0.0
    %531 = vmatpush1.msra.mxu0 %v504
    %532 = vmatprep.subr.mxu0 0.0
    %533 = vmatpush1.msra.mxu0 %v505
    %534 = vmatprep.subr.mxu0 0.0
    %535 = vmatpush1.msra.mxu0 %v506
    %536 = vmatprep.subr.mxu0 0.0
    %537 = vmatpush1.msra.mxu0 %v507
    %538 = vmatprep.subr.mxu0 0.0
    %539 = vmatpush1.msra.mxu0 %v508
    %540 = vmatprep.subr.mxu0 0.0
    %541 = vmatpush1.msra.mxu0 %v509
    %542 = vmatprep.subr.mxu0 0.0
    %543 = vmatpush1.msra.mxu0 %v510
    %544 = vmatprep.subr.mxu0 0.0
    %545 = vmatpush1.msra.mxu0 %v511
    %546 = vmatprep.subr.mxu0 0.0
    %547 = vmatpush1.msra.mxu0 %v512
    %548 = vmatprep.subr.mxu0 0.0
    %549 = vmatpush1.msra.mxu0 %v513
    %550 = vmatprep.subr.mxu0 0.0
    %551 = vmatpush1.msra.mxu0 %v514
    %552 = vmatprep.subr.mxu0 0.0
    %553 = vmatpush1.msra.mxu0 %v515
    %554 = vmatprep.subr.mxu0 0.0
    %555 = vmatpush1.msra.mxu0 %v516
    %556 = vmatprep.subr.mxu0 0.0
    %557 = vmatpush1.msra.mxu0 %v517
    %558 = vmatprep.subr.mxu0 0.0
    %559 = vmatpush1.msra.mxu0 0.0
    %560 = vmatprep.subr.mxu0 0.0
    %561 = vmatpush1.msra.mxu0 0.0
    %562 = vmatprep.subr.mxu0 0.0
    %563 = vmatpush1.msra.mxu0 0.0
    %564 = vmatprep.subr.mxu0 0.0
    %565 = vmatpush1.msra.mxu0 0.0
    %566 = vmatprep.subr.mxu0 0.0
    %567 = vmatpush1.msra.mxu0 0.0
    %568 = vmatprep.subr.mxu0 0.0
    %569 = vmatpush1.msra.mxu0 0.0
    %570 = vmatprep.subr.mxu0 0.0
    %571 = vmatpush1.msra.mxu0 0.0
    %572 = vmatprep.subr.mxu0 0.0
    %573 = vmatpush1.msra.mxu0 0.0
    %574 = vmatprep.subr.mxu0 0.0
    %575 = vmatpush1.msra.mxu0 0.0
    %576 = vmatprep.subr.mxu0 0.0
    %577 = vmatpush1.msra.mxu0 0.0
    %578 = vmatprep.subr.mxu0 0.0
    %579 = vmatpush1.msra.mxu0 0.0
    %580 = vmatprep.subr.mxu0 0.0
    %581 = vmatpush1.msra.mxu0 0.0
    %582 = vmatprep.subr.mxu0 0.0
    %583 = vmatpush1.msra.mxu0 0.0
    %584 = vmatprep.subr.mxu0 0.0
    %585 = vmatpush1.msra.mxu0 0.0
    %586 = vmatprep.subr.mxu0 0.0
    %587 = vmatpush1.msra.mxu0 0.0
    %588 = vmatprep.subr.mxu0 0.0
    %589 = vmatpush1.msra.mxu0 0.0
    %590 = vmatprep.mubr.f32.mxu0 0.0
    %591 = vmatmul.mubr.f32.gmra.mrb[0].mxu0 %v500
    %v592 = vpop.f32.mrb[0].mxu0
    %v593 = vadd.f32 %v524, %v592
    %v594 = vpop.f32.mrb[0].mxu0
    %595 = vdwg.mxu0
    %v596 = vtanh.pop %v593
    %v597 = vld [vmem:[#allocation11] sm:$0xff]
    %v598 = vld [vmem:[#allocation11 + $0x8] sm:$0xff]
    %v599 = vld [vmem:[#allocation11 + $0x10] sm:$0xff]
    %v600 = vld [vmem:[#allocation11 + $0x18] sm:$0xff]
    %v601 = vld [vmem:[#allocation11 + $0x20] sm:$0xff]
    %v602 = vld [vmem:[#allocation11 + $0x28] sm:$0xff]
    %v603 = vld [vmem:[#allocation11 + $0x30] sm:$0xff]
    %v604 = vld [vmem:[#allocation11 + $0x38] sm:$0xff]
    %v605 = vld [vmem:[#allocation11 + $0x40] sm:$0xff]
    %v606 = vld [vmem:[#allocation11 + $0x48] sm:$0xff]
    %v607 = vld [vmem:[#allocation11 + $0x50] sm:$0xff]
    %v608 = vld [vmem:[#allocation11 + $0x58] sm:$0xff]
    %v609 = vld [vmem:[#allocation11 + $0x60] sm:$0xff]
    %v610 = vld [vmem:[#allocation11 + $0x68] sm:$0xff]
    %v611 = vld [vmem:[#allocation11 + $0x70] sm:$0xff]
    %v612 = vld [vmem:[#allocation11 + $0x78] sm:$0xff]
    %v613 = vld [vmem:[%s10] sm:$0x1]
    %v615 = vlaneseq
    %v616 = vshrl.u32 %v615, 7
    %v617 = vsub.s32 0, %v616
    %v618 = vrot.slane %v613, %v617
    %620 = vmatprep.subr.mxu0 0.0
    %621 = vmatpush1.msra.mxu0 %v597
    %622 = vmatprep.subr.mxu0 0.0
    %623 = vmatpush1.msra.mxu0 %v598
    %624 = vmatprep.subr.mxu0 0.0
    %625 = vmatpush1.msra.mxu0 %v599
    %626 = vmatprep.subr.mxu0 0.0
    %627 = vmatpush1.msra.mxu0 %v600
    %628 = vmatprep.subr.mxu0 0.0
    %629 = vmatpush1.msra.mxu0 %v601
    %630 = vmatprep.subr.mxu0 0.0
    %631 = vmatpush1.msra.mxu0 %v602
    %632 = vmatprep.subr.mxu0 0.0
    %633 = vmatpush1.msra.mxu0 %v603
    %634 = vmatprep.subr.mxu0 0.0
    %635 = vmatpush1.msra.mxu0 %v604
    %636 = vmatprep.subr.mxu0 0.0
    %637 = vmatpush1.msra.mxu0 %v605
    %638 = vmatprep.subr.mxu0 0.0
    %639 = vmatpush1.msra.mxu0 %v606
    %640 = vmatprep.subr.mxu0 0.0
    %641 = vmatpush1.msra.mxu0 %v607
    %642 = vmatprep.subr.mxu0 0.0
    %643 = vmatpush1.msra.mxu0 %v608
    %644 = vmatprep.subr.mxu0 0.0
    %645 = vmatpush1.msra.mxu0 %v609
    %646 = vmatprep.subr.mxu0 0.0
    %647 = vmatpush1.msra.mxu0 %v610
    %648 = vmatprep.subr.mxu0 0.0
    %649 = vmatpush1.msra.mxu0 %v611
    %650 = vmatprep.subr.mxu0 0.0
    %651 = vmatpush1.msra.mxu0 %v612
    %652 = vmatprep.subr.mxu0 0.0
    %653 = vmatpush1.msra.mxu0 0.0
    %654 = vmatprep.subr.mxu0 0.0
    %655 = vmatpush1.msra.mxu0 0.0
    %656 = vmatprep.subr.mxu0 0.0
    %657 = vmatpush1.msra.mxu0 0.0
    %658 = vmatprep.subr.mxu0 0.0
    %659 = vmatpush1.msra.mxu0 0.0
    %660 = vmatprep.subr.mxu0 0.0
    %661 = vmatpush1.msra.mxu0 0.0
    %662 = vmatprep.subr.mxu0 0.0
    %663 = vmatpush1.msra.mxu0 0.0
    %664 = vmatprep.subr.mxu0 0.0
    %665 = vmatpush1.msra.mxu0 0.0
    %666 = vmatprep.subr.mxu0 0.0
    %667 = vmatpush1.msra.mxu0 0.0
    %668 = vmatprep.subr.mxu0 0.0
    %669 = vmatpush1.msra.mxu0 0.0
    %670 = vmatprep.subr.mxu0 0.0
    %671 = vmatpush1.msra.mxu0 0.0
    %672 = vmatprep.subr.mxu0 0.0
    %673 = vmatpush1.msra.mxu0 0.0
    %674 = vmatprep.subr.mxu0 0.0
    %675 = vmatpush1.msra.mxu0 0.0
    %676 = vmatprep.subr.mxu0 0.0
    %677 = vmatpush1.msra.mxu0 0.0
    %678 = vmatprep.subr.mxu0 0.0
    %679 = vmatpush1.msra.mxu0 0.0
    %680 = vmatprep.subr.mxu0 0.0
    %681 = vmatpush1.msra.mxu0 0.0
    %682 = vmatprep.subr.mxu0 0.0
    %683 = vmatpush1.msra.mxu0 0.0
    %684 = vmatprep.mubr.f32.mxu0 0.0
    %685 = vmatmul.mubr.f32.gmra.mrb[0].mxu0 %v596
    %v686 = vpop.f32.mrb[0].mxu0
    %v687 = vadd.f32 %v618, %v686
    %v688 = vpop.f32.mrb[0].mxu0
    %689 = vdwg.mxu0
    %v690 = vtanh.pop %v687
    %691 = vst [vmem:[#allocation14] sm:$0xff] %v690
    %v692 = vld [vmem:[#allocation10] sm:$0xff]
    %v693 = vld [vmem:[#allocation10 + $0x8] sm:$0xff]
    %v694 = vld [vmem:[#allocation10 + $0x10] sm:$0xff]
    %v695 = vld [vmem:[#allocation10 + $0x18] sm:$0xff]
    %v696 = vld [vmem:[#allocation10 + $0x20] sm:$0xff]
    %v697 = vld [vmem:[#allocation10 + $0x28] sm:$0xff]
    %v698 = vld [vmem:[#allocation10 + $0x30] sm:$0xff]
    %v699 = vld [vmem:[#allocation10 + $0x38] sm:$0xff]
    %v700 = vld [vmem:[#allocation10 + $0x40] sm:$0xff]
    %v701 = vld [vmem:[#allocation10 + $0x48] sm:$0xff]
    %v702 = vld [vmem:[#allocation10 + $0x50] sm:$0xff]
    %v703 = vld [vmem:[#allocation10 + $0x58] sm:$0xff]
    %v704 = vld [vmem:[#allocation10 + $0x60] sm:$0xff]
    %v705 = vld [vmem:[#allocation10 + $0x68] sm:$0xff]
    %v706 = vld [vmem:[#allocation10 + $0x70] sm:$0xff]
    %v707 = vld [vmem:[#allocation10 + $0x78] sm:$0xff]
    %v708 = vld [vmem:[%s8] sm:$0x1]
    %v710 = vlaneseq
    %v711 = vshrl.u32 %v710, 7
    %v712 = vsub.s32 0, %v711
    %v713 = vrot.slane %v708, %v712
    %715 = vmatprep.subr.mxu0 0.0
    %716 = vmatpush1.msra.mxu0 %v692
    %717 = vmatprep.subr.mxu0 0.0
    %718 = vmatpush1.msra.mxu0 %v693
    %719 = vmatprep.subr.mxu0 0.0
    %720 = vmatpush1.msra.mxu0 %v694
    %721 = vmatprep.subr.mxu0 0.0
    %722 = vmatpush1.msra.mxu0 %v695
    %723 = vmatprep.subr.mxu0 0.0
    %724 = vmatpush1.msra.mxu0 %v696
    %725 = vmatprep.subr.mxu0 0.0
    %726 = vmatpush1.msra.mxu0 %v697
    %727 = vmatprep.subr.mxu0 0.0
    %728 = vmatpush1.msra.mxu0 %v698
    %729 = vmatprep.subr.mxu0 0.0
    %730 = vmatpush1.msra.mxu0 %v699
    %731 = vmatprep.subr.mxu0 0.0
    %732 = vmatpush1.msra.mxu0 %v700
    %733 = vmatprep.subr.mxu0 0.0
    %734 = vmatpush1.msra.mxu0 %v701
    %735 = vmatprep.subr.mxu0 0.0
    %736 = vmatpush1.msra.mxu0 %v702
    %737 = vmatprep.subr.mxu0 0.0
    %738 = vmatpush1.msra.mxu0 %v703
    %739 = vmatprep.subr.mxu0 0.0
    %740 = vmatpush1.msra.mxu0 %v704
    %741 = vmatprep.subr.mxu0 0.0
    %742 = vmatpush1.msra.mxu0 %v705
    %743 = vmatprep.subr.mxu0 0.0
    %744 = vmatpush1.msra.mxu0 %v706
    %745 = vmatprep.subr.mxu0 0.0
    %746 = vmatpush1.msra.mxu0 %v707
    %747 = vmatprep.subr.mxu0 0.0
    %748 = vmatpush1.msra.mxu0 0.0
    %749 = vmatprep.subr.mxu0 0.0
    %750 = vmatpush1.msra.mxu0 0.0
    %751 = vmatprep.subr.mxu0 0.0
    %752 = vmatpush1.msra.mxu0 0.0
    %753 = vmatprep.subr.mxu0 0.0
    %754 = vmatpush1.msra.mxu0 0.0
    %755 = vmatprep.subr.mxu0 0.0
    %756 = vmatpush1.msra.mxu0 0.0
    %757 = vmatprep.subr.mxu0 0.0
    %758 = vmatpush1.msra.mxu0 0.0
    %759 = vmatprep.subr.mxu0 0.0
    %760 = vmatpush1.msra.mxu0 0.0
    %761 = vmatprep.subr.mxu0 0.0
    %762 = vmatpush1.msra.mxu0 0.0
    %763 = vmatprep.subr.mxu0 0.0
    %764 = vmatpush1.msra.mxu0 0.0
    %765 = vmatprep.subr.mxu0 0.0
    %766 = vmatpush1.msra.mxu0 0.0
    %767 = vmatprep.subr.mxu0 0.0
    %768 = vmatpush1.msra.mxu0 0.0
    %769 = vmatprep.subr.mxu0 0.0
    %770 = vmatpush1.msra.mxu0 0.0
    %771 = vmatprep.subr.mxu0 0.0
    %772 = vmatpush1.msra.mxu0 0.0
    %773 = vmatprep.subr.mxu0 0.0
    %774 = vmatpush1.msra.mxu0 0.0
    %775 = vmatprep.subr.mxu0 0.0
    %776 = vmatpush1.msra.mxu0 0.0
    %777 = vmatprep.subr.mxu0 0.0
    %778 = vmatpush1.msra.mxu0 0.0
    %779 = vmatprep.mubr.f32.mxu0 0.0
    %780 = vmatmul.mubr.f32.gmra.mrb[0].mxu0 %v596
    %v781 = vpop.f32.mrb[0].mxu0
    %v782 = vadd.f32 %v713, %v781
    %v783 = vpop.f32.mrb[0].mxu0
    %784 = vdwg.mxu0
    %v785 = vtanh.pop %v782
    %s786 = scalar_lea.vmem [#allocation10], 128
    %v787 = vld [vmem:[%s786] sm:$0xff]
    %v788 = vld [vmem:[%s786 + $0x8] sm:$0xff]
    %v789 = vld [vmem:[%s786 + $0x10] sm:$0xff]
    %v790 = vld [vmem:[%s786 + $0x18] sm:$0xff]
    %v791 = vld [vmem:[%s786 + $0x20] sm:$0xff]
    %v792 = vld [vmem:[%s786 + $0x28] sm:$0xff]
    %v793 = vld [vmem:[%s786 + $0x30] sm:$0xff]
    %v794 = vld [vmem:[%s786 + $0x38] sm:$0xff]
    %v795 = vld [vmem:[%s786 + $0x40] sm:$0xff]
    %v796 = vld [vmem:[%s786 + $0x48] sm:$0xff]
    %v797 = vld [vmem:[%s786 + $0x50] sm:$0xff]
    %v798 = vld [vmem:[%s786 + $0x58] sm:$0xff]
    %v799 = vld [vmem:[%s786 + $0x60] sm:$0xff]
    %v800 = vld [vmem:[%s786 + $0x68] sm:$0xff]
    %v801 = vld [vmem:[%s786 + $0x70] sm:$0xff]
    %v802 = vld [vmem:[%s786 + $0x78] sm:$0xff]
    %s803 = scalar_lea.vmem %s8, 1
    %v804 = vld [vmem:[%s803] sm:$0x1]
    %v806 = vlaneseq
    %v807 = vshrl.u32 %v806, 7
    %v808 = vsub.s32 0, %v807
    %v809 = vrot.slane %v804, %v808
    %811 = vmatprep.subr.mxu0 0.0
    %812 = vmatpush1.msra.mxu0 %v787
    %813 = vmatprep.subr.mxu0 0.0
    %814 = vmatpush1.msra.mxu0 %v788
    %815 = vmatprep.subr.mxu0 0.0
    %816 = vmatpush1.msra.mxu0 %v789
    %817 = vmatprep.subr.mxu0 0.0
    %818 = vmatpush1.msra.mxu0 %v790
    %819 = vmatprep.subr.mxu0 0.0
    %820 = vmatpush1.msra.mxu0 %v791
    %821 = vmatprep.subr.mxu0 0.0
    %822 = vmatpush1.msra.mxu0 %v792
    %823 = vmatprep.subr.mxu0 0.0
    %824 = vmatpush1.msra.mxu0 %v793
    %825 = vmatprep.subr.mxu0 0.0
    %826 = vmatpush1.msra.mxu0 %v794
    %827 = vmatprep.subr.mxu0 0.0
    %828 = vmatpush1.msra.mxu0 %v795
    %829 = vmatprep.subr.mxu0 0.0
    %830 = vmatpush1.msra.mxu0 %v796
    %831 = vmatprep.subr.mxu0 0.0
    %832 = vmatpush1.msra.mxu0 %v797
    %833 = vmatprep.subr.mxu0 0.0
    %834 = vmatpush1.msra.mxu0 %v798
    %835 = vmatprep.subr.mxu0 0.0
    %836 = vmatpush1.msra.mxu0 %v799
    %837 = vmatprep.subr.mxu0 0.0
    %838 = vmatpush1.msra.mxu0 %v800
    %839 = vmatprep.subr.mxu0 0.0
    %840 = vmatpush1.msra.mxu0 %v801
    %841 = vmatprep.subr.mxu0 0.0
    %842 = vmatpush1.msra.mxu0 %v802
    %843 = vmatprep.subr.mxu0 0.0
    %844 = vmatpush1.msra.mxu0 0.0
    %845 = vmatprep.subr.mxu0 0.0
    %846 = vmatpush1.msra.mxu0 0.0
    %847 = vmatprep.subr.mxu0 0.0
    %848 = vmatpush1.msra.mxu0 0.0
    %849 = vmatprep.subr.mxu0 0.0
    %850 = vmatpush1.msra.mxu0 0.0
    %851 = vmatprep.subr.mxu0 0.0
    %852 = vmatpush1.msra.mxu0 0.0
    %853 = vmatprep.subr.mxu0 0.0
    %854 = vmatpush1.msra.mxu0 0.0
    %855 = vmatprep.subr.mxu0 0.0
    %856 = vmatpush1.msra.mxu0 0.0
    %857 = vmatprep.subr.mxu0 0.0
    %858 = vmatpush1.msra.mxu0 0.0
    %859 = vmatprep.subr.mxu0 0.0
    %860 = vmatpush1.msra.mxu0 0.0
    %861 = vmatprep.subr.mxu0 0.0
    %862 = vmatpush1.msra.mxu0 0.0
    %863 = vmatprep.subr.mxu0 0.0
    %864 = vmatpush1.msra.mxu0 0.0
    %865 = vmatprep.subr.mxu0 0.0
    %866 = vmatpush1.msra.mxu0 0.0
    %867 = vmatprep.subr.mxu0 0.0
    %868 = vmatpush1.msra.mxu0 0.0
    %869 = vmatprep.subr.mxu0 0.0
    %870 = vmatpush1.msra.mxu0 0.0
    %871 = vmatprep.subr.mxu0 0.0
    %872 = vmatpush1.msra.mxu0 0.0
    %873 = vmatprep.subr.mxu0 0.0
    %874 = vmatpush1.msra.mxu0 0.0
    %875 = vmatprep.mubr.f32.mxu0 0.0
    %876 = vmatmul.mubr.f32.gmra.mrb[0].mxu0 %v785
    %v877 = vpop.f32.mrb[0].mxu0
    %v878 = vadd.f32 %v809, %v877
    %v879 = vpop.f32.mrb[0].mxu0
    %880 = vdwg.mxu0
    %881 = vst [vmem:[#allocation13] sm:$0xff] %v878
    // Predicated region
    $region70: #{tpu_custom_call.1} parent=1 // pred_check
      _
    $region71: #{tpu_custom_call.1} parent=1 // pred_check_branch
      %883 = sbr.rel (0) target = $region73
    $region72: #{tpu_custom_call.1} parent=1 // pred_region
      %s885 = ssub.s32 128, 128
      %886 = vsyncadd [#allocation4], %s885
      %s888 = sshll.u32 [#allocation13], 4
      %s889 = int_to_ptr.vmem [resolvable:$true] %s888
      %891 = dma.vmem_to_hbm [thread:$0]  %s889, 128, %s11, [#allocation4]
    $region73: #{tpu_custom_call.1} parent=1 // pred_fallthru
      _
    // Predicated region
    $region74: #{tpu_custom_call.1} parent=1 // pred_check
      _
    $region75: #{tpu_custom_call.1} parent=1 // pred_check_branch
      %893 = sbr.rel (0) target = $region77
    $region76: #{tpu_custom_call.1} parent=1 // pred_region
      %s895 = ssub.s32 128, 128
      %896 = vsyncadd [#allocation15], %s895
      %s898 = sshll.u32 [#allocation14], 4
      %s899 = int_to_ptr.vmem [resolvable:$true] %s898
      %901 = dma.vmem_to_hbm [thread:$0]  %s899, 128, %s12, [#allocation15]
    $region77: #{tpu_custom_call.1} parent=1 // pred_fallthru
      _
    // Predicated region
    $region78: #{tpu_custom_call.1} parent=1 // pred_check
      _
    $region79: #{tpu_custom_call.1} parent=1 // pred_check_branch
      %903 = sbr.rel (0) target = $region81
    $region80: #{tpu_custom_call.1} parent=1 // pred_region
      %904 = dma.done [#allocation4], 128
    $region81: #{tpu_custom_call.1} parent=1 // pred_fallthru
      _
    // Predicated region
    $region82: #{tpu_custom_call.1} parent=1 // pred_check
      _
    $region83: #{tpu_custom_call.1} parent=1 // pred_check_branch
      %906 = sbr.rel (0) target = $region85
    $region84: #{tpu_custom_call.1} parent=1 // pred_region
      %907 = dma.done [#allocation15], 128
    $region85: #{tpu_custom_call.1} parent=1 // pred_fallthru
      _
    %908 = vsyncpa [#allocation3], 1
    %909 = vsyncpa [#allocation6], 1
    %910 = vsyncpa [#allocation9], 1
    %911 = vsyncpa [#allocation12], 1
    %912 = vsyncpa [#allocation4], 1
    %913 = vsyncpa [#allocation15], 1

</llo_original>
